<compile_context>
chip_gen: v5e
topology: v5e:2x2
jax: 0.10.0
libtpu: 0.0.40
codegen_flags: <defaults>
</compile_context>

<pallas_src>
import jax
import jax.numpy as jnp
from jax.experimental import pallas as pl
from jax.experimental.pallas import tpu as pltpu


_TILE_R_MAX = 128     # sublane-axis tile target (multiple of 8)
_TILE_S_MAX = 4096    # lane-axis tile target   (multiple of 128)


def _make_partial_kernel(tile_s, s_tail):
    """Kernel: per-(row-tile, col-tile) partial sums of |x - y| over lanes.

    x_ref, y_ref : (TILE_R, TILE_S) input tiles (native dtype)
    out_ref      : (1, TILE_R, 1) per-row partial sums for this column tile
    """
    needs_mask = (s_tail != tile_s)

    def kernel(x_ref, y_ref, out_ref):
        k = pl.program_id(0)                       # column-tile index
        x = x_ref[...].astype(jnp.float32)
        y = y_ref[...].astype(jnp.float32)
        d = jnp.abs(x - y)

        if needs_mask:
            # Ragged spatial tail: zero the out-of-bounds lanes of the last
            # column tile (edge-block contents are unspecified on TPU).
            lane = jax.lax.broadcasted_iota(jnp.int32, d.shape, 1)
            limit = jnp.where(k == pl.num_programs(0) - 1, s_tail, tile_s)
            d = jnp.where(lane < limit, d, 0.0)

        # Cross-lane reduce (XLU slot, idle in this HBM-bound kernel).
        out_ref[0] = jnp.sum(d, axis=-1, keepdims=True)

    return kernel


def cwl1_loss(inp, tgt, weights=(2.0, 2.0, 0.2)):
    """Channel-weighted L1 loss.  inp/tgt: (N, C, H, W); returns a scalar."""
    assert inp.shape == tgt.shape
    N, C, H, W = inp.shape
    assert C == len(weights)

    R, S = N * C, H * W
    x2d = inp.reshape(R, S)              # native dtype: halves HBM bytes for bf16
    y2d = tgt.reshape(R, S)

    TILE_R = R if R <= _TILE_R_MAX else _TILE_R_MAX
    TILE_S = S if S <= _TILE_S_MAX else _TILE_S_MAX
    RT = pl.cdiv(R, TILE_R)              # row tiles
    KT = pl.cdiv(S, TILE_S)              # column (spatial) tiles
    R_pad = RT * TILE_R                  # output rows incl. overhang (no input pad)
    s_tail = S - (KT - 1) * TILE_S       # valid lanes in the last column tile

    kernel = _make_partial_kernel(TILE_S, s_tail)

    partials = pl.pallas_call(
        kernel,
        out_shape=jax.ShapeDtypeStruct((KT, R_pad, 1), jnp.float32),
        grid_spec=pltpu.PrefetchScalarGridSpec(
            num_scalar_prefetch=0,
            grid=(KT, RT),
            in_specs=[
                pl.BlockSpec((TILE_R, TILE_S), lambda k, i: (i, k)),
                pl.BlockSpec((TILE_R, TILE_S), lambda k, i: (i, k)),
            ],
            out_specs=pl.BlockSpec((1, TILE_R, 1), lambda k, i: (k, i, 0)),
        ),
        compiler_params=pltpu.CompilerParams(
            dimension_semantics=("parallel", "parallel"),
            vmem_limit_bytes=32 * 1024 * 1024,
        ),
    )(x2d, y2d)

    # Tiny epilogue on the (KT, R) partials: drop overhang rows, apply the
    # per-channel weight (constant per row, exactly equivalent to weighting
    # every element), then the global mean over the true element count.
    per_row = jnp.sum(partials[:, :R, 0], axis=0).reshape(N, C)
    w = jnp.asarray(weights, dtype=jnp.float32)
    total = jnp.sum(per_row * w[None, :])
    return total / float(N * C * H * W)


def cwl1_loss_ref(inp, tgt, weights=(2.0, 2.0, 0.2)):
    w = jnp.asarray(weights, dtype=jnp.float32).reshape(1, len(weights), 1, 1)
    return jnp.mean(jnp.abs(inp.astype(jnp.float32) - tgt.astype(jnp.float32)) * w)


if __name__ == "__main__":
    key = jax.random.PRNGKey(0)
    k1, k2, k3, k4 = jax.random.split(key, 4)

    # Small shape implied by the module (NCHW, C=3 from the weights buffer).
    N, C, H, W = 2, 3, 16, 16
    x = jax.random.normal(k1, (N, C, H, W), dtype=jnp.float32)
    y = jax.random.normal(k2, (N, C, H, W), dtype=jnp.float32)
    loss = cwl1_loss(x, y)
    jax.block_until_ready(loss)
    ref = cwl1_loss_ref(x, y)
    assert jnp.allclose(loss, ref, rtol=1e-5, atol=1e-6), (loss, ref)

    # Second (still small) shape that exercises the ragged-tail mask path:
    # H*W = 5184 > TILE_S, not a multiple of 4096.
    H2 = W2 = 72
    x2 = jax.random.normal(k3, (N, C, H2, W2), dtype=jnp.float32)
    y2 = jax.random.normal(k4, (N, C, H2, W2), dtype=jnp.float32)
    loss2 = cwl1_loss(x2, y2)
    jax.block_until_ready(loss2)
    ref2 = cwl1_loss_ref(x2, y2)
    assert jnp.allclose(loss2, ref2, rtol=1e-5, atol=1e-6), (loss2, ref2)

    print("KERNEL_OK")
</pallas_src>

<mosaic_0001>
module attributes {stable_mosaic.version = 11 : i64} {
  func.func @kernel(%arg0: i32, %arg1: i32, %arg2: memref<6x256xf32, #tpu.memory_space<vmem>>, %arg3: memref<6x256xf32, #tpu.memory_space<vmem>>, %arg4: memref<1x6x1xf32, #tpu.memory_space<vmem>>) attributes {dimension_semantics = [#tpu.dimension_semantics<parallel>, #tpu.dimension_semantics<parallel>], iteration_bounds = array<i64: 1, 1>, scalar_prefetch = 0 : i64, scratch_operands = 0 : i64, tpu.core_type = #tpu.core_type<tc>, window_params = [{transform_indices = @transform_0, window_bounds = array<i64: 6, 256>}, {transform_indices = @transform_1, window_bounds = array<i64: 6, 256>}, {transform_indices = @transform_2, window_bounds = array<i64: 1, 6, 1>}]} {
    %c0 = arith.constant 0 : index
    %c0_0 = arith.constant 0 : index
    %0 = vector.load %arg2[%c0, %c0_0] : memref<6x256xf32, #tpu.memory_space<vmem>>, vector<6x256xf32>
    %c0_1 = arith.constant 0 : index
    %c0_2 = arith.constant 0 : index
    %1 = vector.load %arg3[%c0_1, %c0_2] : memref<6x256xf32, #tpu.memory_space<vmem>>, vector<6x256xf32>
    %2 = arith.subf %0, %1 : vector<6x256xf32>
    %3 = math.absf %2 : vector<6x256xf32>
    %cst = arith.constant dense<0.000000e+00> : vector<6xf32>
    %4 = vector.multi_reduction <add>, %3, %cst [1] : vector<6x256xf32> to vector<6xf32>
    %5 = vector.shape_cast %4 : vector<6xf32> to vector<6x1xf32>
    %c0_3 = arith.constant 0 : index
    %c0_4 = arith.constant 0 : index
    %c0_5 = arith.constant 0 : index
    %6 = vector.load %arg4[%c0_3, %c0_4, %c0_5] : memref<1x6x1xf32, #tpu.memory_space<vmem>>, vector<1x6x1xf32>
    %7 = vector.shape_cast %6 : vector<1x6x1xf32> to vector<6x1xf32>
    %8 = vector.shape_cast %5 : vector<6x1xf32> to vector<1x6x1xf32>
    tpu.vector_store %arg4[%c0_3, %c0_4, %c0_5], %8 {strides = array<i32>} : memref<1x6x1xf32, #tpu.memory_space<vmem>>, vector<1x6x1xf32>,
    return
  }
  func.func @transform_0(%arg0: i32, %arg1: i32) -> (i32, i32) {
    %c0_i32 = arith.constant 0 : i32
    return %arg1, %arg0 : i32, i32
  }
  func.func @transform_1(%arg0: i32, %arg1: i32) -> (i32, i32) {
    %c0_i32 = arith.constant 0 : i32
    return %arg1, %arg0 : i32, i32
  }
  func.func @transform_2(%arg0: i32, %arg1: i32) -> (i32, i32, i32) {
    %c0_i32 = arith.constant 0 : i32
    %c0_i32_0 = arith.constant 0 : i32
    return %arg0, %arg1, %c0_i32 : i32, i32, i32
  }
}

</mosaic_0001>

<llo_original>
// kernel: tpu_custom_call.1
$region0: #{tpu_custom_call.1}
  #allocation0 [shape = 'u32[]', space=smem, size = 0x4, offset = 0x4, fixed_abs, tag = 'smem constant byte address 0x4 - core index']
  #allocation1 [shape = 'u32[72,128]{1,0:T(1,128)}', space=vmem, size = 0x9000, scoped, tag = 'internal scratch']
  %s0 = inlined_call_operand.hbm [shape: f32[6,256], index: 0, kind: input, shape index: {}]
  %s1 = inlined_call_operand.hbm [shape: f32[6,256], index: 1, kind: input, shape index: {}]
  %s2 = inlined_call_operand.vmem [shape: f32[1,6,1], index: 2, kind: output, shape index: {}]
  %s3 = sld [smem:[#allocation0]]
  $region26: #{tpu_custom_call.1} parent=0
    _
  %s5 = ssub.s32 1, %s3
  %s6 = scalar_select 0, %s5, %s3
  $region1: #{tpu_custom_call.1} parent=0
    #allocation2 [shape = 'u8[8192]{0}', space=vmem, size = 0x2000, scoped, tag = 'input window, operand 0, single buffered']
    #allocation3 [shape = 's32[1]{0}', space=sflag, size = 0x4, scoped, tag = 'scoped memory for tpu_custom_call.1']
    #allocation4 [shape = 'u8[8192]{0}', space=vmem, size = 0x2000, scoped, tag = 'input window, operand 1, single buffered']
    #allocation5 [shape = 's32[1]{0}', space=sflag, size = 0x4, scoped, tag = 'scoped memory for tpu_custom_call.1']
    %7 = vsyncpa [#allocation3], 0
    %8 = vsyncpa [#allocation5], 0
    // Predicated region
    $region2: #{tpu_custom_call.1} parent=1 // pred_check
      _
    $region3: #{tpu_custom_call.1} parent=1 // pred_check_branch
      %10 = sbr.rel (0) target = $region5
    $region4: #{tpu_custom_call.1} parent=1 // pred_region
      %12 = vsyncadd [#allocation3], 0
      %s14 = sshll.u32 %s0, 4
      %s15 = int_to_ptr.hbm [resolvable:$true] %s14
      %s16 = sshll.u32 [#allocation2], 4
      %s17 = int_to_ptr.vmem [resolvable:$true] %s16
      %19 = dma.hbm_to_vmem [thread:$0]  %s15, 256, %s17, [#allocation3]
    $region5: #{tpu_custom_call.1} parent=1 // pred_fallthru
      _
    // Predicated region
    $region6: #{tpu_custom_call.1} parent=1 // pred_check
      _
    $region7: #{tpu_custom_call.1} parent=1 // pred_check_branch
      %21 = sbr.rel (0) target = $region9
    $region8: #{tpu_custom_call.1} parent=1 // pred_region
      %23 = vsyncadd [#allocation5], 0
      %s25 = sshll.u32 %s1, 4
      %s26 = int_to_ptr.hbm [resolvable:$true] %s25
      %s27 = sshll.u32 [#allocation4], 4
      %s28 = int_to_ptr.vmem [resolvable:$true] %s27
      %30 = dma.hbm_to_vmem [thread:$0]  %s26, 256, %s28, [#allocation5]
    $region9: #{tpu_custom_call.1} parent=1 // pred_fallthru
      _
    // Predicated region
    $region10: #{tpu_custom_call.1} parent=1 // pred_check
      _
    $region11: #{tpu_custom_call.1} parent=1 // pred_check_branch
      %32 = sbr.rel (0) target = $region13
    $region12: #{tpu_custom_call.1} parent=1 // pred_region
      %34 = dma.done [#allocation3], 256
    $region13: #{tpu_custom_call.1} parent=1 // pred_fallthru
      _
    // Predicated region
    $region14: #{tpu_custom_call.1} parent=1 // pred_check
      _
    $region15: #{tpu_custom_call.1} parent=1 // pred_check_branch
      %36 = sbr.rel (0) target = $region17
    $region16: #{tpu_custom_call.1} parent=1 // pred_region
      %38 = dma.done [#allocation5], 256
    $region17: #{tpu_custom_call.1} parent=1 // pred_fallthru
      _
    %v39 = vld [vmem:[#allocation2] sm:$0x3f]
    %v40 = vld [vmem:[#allocation2 + $0x8] sm:$0x3f]
    %v41 = vld [vmem:[#allocation4] sm:$0x3f]
    %v42 = vld [vmem:[#allocation4 + $0x8] sm:$0x3f]
    %v43 = vsub.f32 %v39, %v41
    %v44 = vsub.f32 %v40, %v42
    %v45 = vand.u32 2147483647, %v43
    %v46 = vand.u32 2147483647, %v44
    %vm47 = vcmask 1045504
    %v48 = vsel %vm47, %v45, 0.0
    %v49 = vsel %vm47, %v46, 0.0
    %v50 = vadd.f32 %v48, %v49
    %51 = vadd.xlane.f32.xlu0 %v50
    %v52 = vpop.xlane.xlu0 %51
    %vm53 = vcmask 5120
    %54 = vst.msk [vmem:[%s2] sm:$0x3f] %vm53, %v52
    // Predicated region
    $region18: #{tpu_custom_call.1} parent=1 // pred_check
      _
    $region19: #{tpu_custom_call.1} parent=1 // pred_check_branch
      %56 = sbr.rel (0) target = $region21
    $region20: #{tpu_custom_call.1} parent=1 // pred_region
      _
    $region21: #{tpu_custom_call.1} parent=1 // pred_fallthru
      _
    // Predicated region
    $region22: #{tpu_custom_call.1} parent=1 // pred_check
      _
    $region23: #{tpu_custom_call.1} parent=1 // pred_check_branch
      %58 = sbr.rel (0) target = $region25
    $region24: #{tpu_custom_call.1} parent=1 // pred_region
      _
    $region25: #{tpu_custom_call.1} parent=1 // pred_fallthru
      _
    %59 = vsyncpa [#allocation3], 1
    %60 = vsyncpa [#allocation5], 1

</llo_original>
